<compile_context>
chip_gen: v7x
topology: tpu7x:2x2x1
jax: 0.10.0
libtpu: 0.0.40
codegen_flags: <defaults>
</compile_context>

<pallas_src>
import functools

import jax
import jax.numpy as jnp
from jax.experimental import pallas as pl
from jax.experimental.pallas import tpu as pltpu

_LANE = 128      # lane width (last dim) -> unmasked, lane-dense tiles
_SUBLANE = 8     # sublane pack for f32 activations (16 for bf16, 32 for int8/fp8)


def _round_up(n, m):
    return (n + m - 1) // m * m


def _mlp_fused_kernel(x_ref, p_ref, o_ref, *, layout, slope):
    """Fused MLP forward.

    x_ref : (Bp, input_dim)        VMEM
    p_ref : (slab_rows, slab_w)    VMEM -- all weights+biases packed, pre-padded
    o_ref : (Bp, d_out_pad)        VMEM -- lane-dense, single unmasked store

    layout: static tuple of (w_row_off, d_in, b_row_off, d_out_pad) per layer.
    All intermediates live in vregs; only the final activation is stored.
    """
    n_layers = len(layout)
    h = x_ref[...]
    for i, (w_off, d_in, b_off, d_out) in enumerate(layout):
        w = p_ref[w_off:w_off + d_in, :d_out]     # static, sublane-aligned slice
        b = p_ref[b_off:b_off + 1, :d_out]
        # NOTE: operands kept f32 at these toy sizes; cast h/w to bf16 here for
        # the MXU win on v6e/v7x once layers are non-toy.
        y = jnp.dot(h, w, preferred_element_type=jnp.float32) + b
        if i < n_layers - 1:
            # LeakyReLU (slope in [0,1]): one vmul + one vmax
            h = jnp.maximum(y, slope * y)
        else:
            # Sigmoid as a single EUP tanh push (exact, no approx reciprocal)
            h = 0.5 * (jnp.tanh(0.5 * y) + 1.0)
    o_ref[...] = h.astype(o_ref.dtype)


def pack_params(params, input_dim):
    """One-time packing of per-layer (W_t, b) into a single padded VMEM slab.

    Every layer's output width is padded to a multiple of 128 lanes with zero
    columns (and zero bias), so padded activation lanes stay exactly 0 through
    LeakyReLU and contribute nothing downstream.  Each weight/bias block starts
    on an 8-row (sublane) boundary so in-kernel slices are tile-aligned.

    Returns (slab, layout, d_out_true).
    """
    slab_w = max(_round_up(b.shape[0], _LANE) for _, b in params)
    pieces = []
    layout = []
    d_in = input_dim            # width of the activation entering this layer
    off = 0
    for (w_t, b) in params:
        fan_in, fan_out = w_t.shape
        d_out_p = _round_up(fan_out, _LANE)
        d_in_rows = _round_up(d_in, _SUBLANE)

        w_pad = jnp.zeros((d_in_rows, slab_w), jnp.float32)
        w_pad = w_pad.at[:fan_in, :fan_out].set(w_t.astype(jnp.float32))
        b_pad = jnp.zeros((_SUBLANE, slab_w), jnp.float32)
        b_pad = b_pad.at[0, :fan_out].set(b.astype(jnp.float32))

        layout.append((off, d_in, off + d_in_rows, d_out_p))
        pieces.append(w_pad)
        pieces.append(b_pad)
        off += d_in_rows + _SUBLANE
        d_in = d_out_p          # next layer consumes the lane-padded activation

    slab = jnp.concatenate(pieces, axis=0)
    d_out_true = params[-1][1].shape[0]
    return slab, tuple(layout), d_out_true


def simple_nn_forward(x, packed, slope):
    """SimpleNN.forward: hidden layers with LeakyReLU, final layer with Sigmoid.

    Whole problem fits in VMEM, so x and the packed parameter slab are passed
    as full-array VMEM blocks (no grid): 2 input DMAs + 1 output DMA total, and
    the entire forward runs in one kernel invocation.
    """
    slab, layout, d_out_true = packed
    B = x.shape[0]
    bp = _round_up(B, _SUBLANE)
    x_p = x if bp == B else jnp.pad(x, ((0, bp - B), (0, 0)))
    d_out_p = layout[-1][3]

    kernel = functools.partial(_mlp_fused_kernel, layout=layout, slope=slope)
    out_p = pl.pallas_call(
        kernel,
        out_shape=jax.ShapeDtypeStruct((bp, d_out_p), x.dtype),
        in_specs=[pl.BlockSpec(memory_space=pltpu.MemorySpace.VMEM),
                  pl.BlockSpec(memory_space=pltpu.MemorySpace.VMEM)],
        out_specs=pl.BlockSpec(memory_space=pltpu.MemorySpace.VMEM),
    )(x_p, slab)

    # Slice the lane-dense slab back to the true output shape.
    # (Padded lanes hold sigmoid(0)=0.5; they are discarded here.)
    return out_p[:B, :d_out_true]


def init_params(key, input_dim, hidden_layers, output_dim):
    """Deterministic PyTorch-style init: U(-1/sqrt(fan_in), 1/sqrt(fan_in)).

    Weights stored as (fan_in, fan_out) == torch weight (fan_out, fan_in)
    transposed, i.e. already in kernel layout (before padding/packing).
    """
    params = []
    dims = [input_dim] + list(hidden_layers) + [output_dim]
    for i in range(len(dims) - 1):
        fan_in, fan_out = dims[i], dims[i + 1]
        key, kw, kb = jax.random.split(key, 3)
        bound = 1.0 / jnp.sqrt(float(fan_in))
        w_t = jax.random.uniform(kw, (fan_in, fan_out), jnp.float32, -bound, bound)
        b = jax.random.uniform(kb, (fan_out,), jnp.float32, -bound, bound)
        params.append((w_t, b))
    return params


if __name__ == "__main__":
    # Small shapes consistent with the module: batch=8, input_dim=16,
    # hidden_layers=[32, 32], output_dim=4, slope=0.01
    input_dim = 16
    hidden_layers = [32, 32]
    output_dim = 4
    slope = 0.01
    batch = 8

    key = jax.random.PRNGKey(0)
    key, kx = jax.random.split(key)
    x = jax.random.normal(kx, (batch, input_dim), jnp.float32)

    params = init_params(key, input_dim, hidden_layers, output_dim)
    packed = pack_params(params, input_dim)       # one-time: pad + pack to slab

    out = simple_nn_forward(x, packed, slope)
    out = jax.block_until_ready(out)

    # sanity: reference in plain JAX on the unpacked params
    ref = x
    for i, (w_t, b) in enumerate(params):
        ref = ref @ w_t + b
        if i < len(params) - 1:
            ref = jnp.where(ref >= 0.0, ref, slope * ref)
        else:
            ref = jax.nn.sigmoid(ref)

    assert out.shape == (batch, output_dim)
    assert jnp.allclose(out, ref, atol=1e-5, rtol=1e-5), (
        f"max abs err {jnp.max(jnp.abs(out - ref))}")

    print("KERNEL_OK")
</pallas_src>

<mosaic_0001>
module attributes {stable_mosaic.version = 11 : i64} {
  func.func @_mlp_fused_kernel(%arg0: memref<8x16xf32, #tpu.memory_space<vmem>>, %arg1: memref<296x128xf32, #tpu.memory_space<vmem>>, %arg2: memref<8x128xf32, #tpu.memory_space<vmem>>) attributes {dimension_semantics = [], scalar_prefetch = 0 : i64, scratch_operands = 0 : i64, tpu.core_type = #tpu.core_type<tc>} {
    %c0 = arith.constant 0 : index
    %c0_0 = arith.constant 0 : index
    %0 = vector.load %arg0[%c0, %c0_0] : memref<8x16xf32, #tpu.memory_space<vmem>>, vector<8x16xf32>
    %c0_1 = arith.constant 0 : index
    %c0_2 = arith.constant 0 : index
    %1 = vector.load %arg1[%c0_1, %c0_2] : memref<296x128xf32, #tpu.memory_space<vmem>>, vector<16x128xf32>
    %c16 = arith.constant 16 : index
    %c0_3 = arith.constant 0 : index
    %2 = vector.load %arg1[%c16, %c0_3] : memref<296x128xf32, #tpu.memory_space<vmem>>, vector<1x128xf32>
    %cst = arith.constant dense<0.000000e+00> : vector<8x128xf32>
    %3 = tpu.matmul %0, %1, %cst {dimension_numbers = #tpu.dot_dimension_numbers<[1], [0], [0], [1], [0, 0, 1, 1], [], []>} : vector<8x16xf32>, vector<16x128xf32>, vector<8x128xf32> -> vector<8x128xf32>
    %4 = vector.broadcast %2 : vector<1x128xf32> to vector<8x128xf32>
    %5 = arith.addf %3, %4 : vector<8x128xf32>
    %cst_4 = arith.constant 0.00999999977 : f32
    %6 = vector.broadcast %cst_4 : f32 to vector<8x128xf32>
    %7 = arith.mulf %6, %5 : vector<8x128xf32>
    %8 = arith.maximumf %5, %7 : vector<8x128xf32>
    %c24 = arith.constant 24 : index
    %c0_5 = arith.constant 0 : index
    %9 = vector.load %arg1[%c24, %c0_5] : memref<296x128xf32, #tpu.memory_space<vmem>>, vector<128x128xf32>
    %c152 = arith.constant 152 : index
    %c0_6 = arith.constant 0 : index
    %10 = vector.load %arg1[%c152, %c0_6] : memref<296x128xf32, #tpu.memory_space<vmem>>, vector<1x128xf32>
    %cst_7 = arith.constant dense<0.000000e+00> : vector<8x128xf32>
    %11 = tpu.matmul %8, %9, %cst_7 {dimension_numbers = #tpu.dot_dimension_numbers<[1], [0], [0], [1], [0, 0, 1, 1], [], []>} : vector<8x128xf32>, vector<128x128xf32>, vector<8x128xf32> -> vector<8x128xf32>
    %12 = vector.broadcast %10 : vector<1x128xf32> to vector<8x128xf32>
    %13 = arith.addf %11, %12 : vector<8x128xf32>
    %cst_8 = arith.constant 0.00999999977 : f32
    %14 = vector.broadcast %cst_8 : f32 to vector<8x128xf32>
    %15 = arith.mulf %14, %13 : vector<8x128xf32>
    %16 = arith.maximumf %13, %15 : vector<8x128xf32>
    %c160 = arith.constant 160 : index
    %c0_9 = arith.constant 0 : index
    %17 = vector.load %arg1[%c160, %c0_9] : memref<296x128xf32, #tpu.memory_space<vmem>>, vector<128x128xf32>
    %c288 = arith.constant 288 : index
    %c0_10 = arith.constant 0 : index
    %18 = vector.load %arg1[%c288, %c0_10] : memref<296x128xf32, #tpu.memory_space<vmem>>, vector<1x128xf32>
    %cst_11 = arith.constant dense<0.000000e+00> : vector<8x128xf32>
    %19 = tpu.matmul %16, %17, %cst_11 {dimension_numbers = #tpu.dot_dimension_numbers<[1], [0], [0], [1], [0, 0, 1, 1], [], []>} : vector<8x128xf32>, vector<128x128xf32>, vector<8x128xf32> -> vector<8x128xf32>
    %20 = vector.broadcast %18 : vector<1x128xf32> to vector<8x128xf32>
    %21 = arith.addf %19, %20 : vector<8x128xf32>
    %cst_12 = arith.constant 5.000000e-01 : f32
    %22 = vector.broadcast %cst_12 : f32 to vector<8x128xf32>
    %23 = arith.mulf %22, %21 : vector<8x128xf32>
    %24 = math.tanh %23 : vector<8x128xf32>
    %cst_13 = arith.constant 1.000000e+00 : f32
    %25 = vector.broadcast %cst_13 : f32 to vector<8x128xf32>
    %26 = arith.addf %24, %25 : vector<8x128xf32>
    %cst_14 = arith.constant 5.000000e-01 : f32
    %27 = vector.broadcast %cst_14 : f32 to vector<8x128xf32>
    %28 = arith.mulf %27, %26 : vector<8x128xf32>
    %c0_15 = arith.constant 0 : index
    %c0_16 = arith.constant 0 : index
    %29 = vector.load %arg2[%c0_15, %c0_16] : memref<8x128xf32, #tpu.memory_space<vmem>>, vector<8x128xf32>
    tpu.vector_store %arg2[%c0_15, %c0_16], %28 {strides = array<i32>} : memref<8x128xf32, #tpu.memory_space<vmem>>, vector<8x128xf32>,
    return
  }
}

</mosaic_0001>

<llo_original>
// kernel: tpu_custom_call.1
$region0: #{tpu_custom_call.1}
  #allocation0 [shape = 'u32[]', space=smem, size = 0x4, offset = 0x4, fixed_abs, tag = 'smem constant byte address 0x4 - core index']
  #allocation1 [shape = 'u32[144,128]{1,0:T(1,128)}', space=vmem, size = 0x12000, scoped, tag = 'internal scratch']
  %s0 = inlined_call_operand.hbm [shape: f32[8,16], index: 0, kind: input, shape index: {}]
  %s1 = inlined_call_operand.hbm [shape: f32[296,128], index: 1, kind: input, shape index: {}]
  %s2 = inlined_call_operand.hbm [shape: f32[8,128], index: 2, kind: output, shape index: {}]
  %s3 = sld [smem:[#allocation0]]
  $region26: #{tpu_custom_call.1} parent=0
    _
  %s5 = ssub.s32 1, %s3
  %s6 = scalar_select 0, %s5, %s3
  $region1: #{tpu_custom_call.1} parent=0
    #allocation2 [shape = 'u8[4096]{0}', space=vmem, size = 0x1000, scoped, tag = 'input window, operand 0, single buffered']
    #allocation3 [shape = 's32[1]{0}', space=sflag, size = 0x4, scoped, tag = 'scoped memory for tpu_custom_call.1']
    #allocation4 [shape = 's32[1]{0}', space=sflag, size = 0x4, scoped, tag = 'scoped memory for tpu_custom_call.1']
    #allocation5 [shape = 'u8[151552]{0}', space=vmem, size = 0x25000, scoped, tag = 'input window, operand 1, single buffered']
    #allocation6 [shape = 's32[1]{0}', space=sflag, size = 0x4, scoped, tag = 'scoped memory for tpu_custom_call.1']
    #allocation7 [shape = 'u8[4096]{0}', space=vmem, size = 0x1000, scoped, tag = 'output window, operand 0, single buffered']
    %7 = vsyncpa [#allocation3], 0
    %8 = vsyncpa [#allocation6], 0
    %9 = vsyncpa [#allocation4], 0
    // Predicated region
    $region2: #{tpu_custom_call.1} parent=1 // pred_check
      _
    $region3: #{tpu_custom_call.1} parent=1 // pred_check_branch
      %11 = sbr.rel (0) target = $region5
    $region4: #{tpu_custom_call.1} parent=1 // pred_region
      %s13 = ssub.s32 128, 128
      %14 = vsyncadd [#allocation3], %s13
      %s16 = sshll.u32 [#allocation2], 4
      %s17 = int_to_ptr.vmem [resolvable:$true] %s16
      %19 = dma.hbm_to_vmem [thread:$0]  %s0, 128, %s17, [#allocation3]
    $region5: #{tpu_custom_call.1} parent=1 // pred_fallthru
      _
    // Predicated region
    $region6: #{tpu_custom_call.1} parent=1 // pred_check
      _
    $region7: #{tpu_custom_call.1} parent=1 // pred_check_branch
      %21 = sbr.rel (0) target = $region9
    $region8: #{tpu_custom_call.1} parent=1 // pred_region
      %s23 = ssub.s32 4736, 4736
      %24 = vsyncadd [#allocation6], %s23
      %s25 = sshll.u32 [#allocation5], 4
      %s26 = int_to_ptr.vmem [resolvable:$true] %s25
      %31 = dma.hbm_to_vmem [thread:$0]  %s1, 4736, %s26, [#allocation6], 128, 128, 8
    $region9: #{tpu_custom_call.1} parent=1 // pred_fallthru
      _
    // Predicated region
    $region10: #{tpu_custom_call.1} parent=1 // pred_check
      _
    $region11: #{tpu_custom_call.1} parent=1 // pred_check_branch
      %33 = sbr.rel (0) target = $region13
    $region12: #{tpu_custom_call.1} parent=1 // pred_region
      %34 = dma.done [#allocation3], 128
    $region13: #{tpu_custom_call.1} parent=1 // pred_fallthru
      _
    // Predicated region
    $region14: #{tpu_custom_call.1} parent=1 // pred_check
      _
    $region15: #{tpu_custom_call.1} parent=1 // pred_check_branch
      %36 = sbr.rel (0) target = $region17
    $region16: #{tpu_custom_call.1} parent=1 // pred_region
      %37 = dma.done [#allocation6], 4736
    $region17: #{tpu_custom_call.1} parent=1 // pred_fallthru
      _
    %v38 = vld [vmem:[#allocation2] sm:$0xff]
    %v39 = vld [vmem:[#allocation5] sm:$0xff]
    %v40 = vld [vmem:[#allocation5 + $0x8] sm:$0xff]
    %v41 = vld [vmem:[#allocation5 + $0x10] sm:$0x1]
    %v42 = vlaneseq
    %v43 = vshrl.u32 %v42, 7
    %v44 = vsub.s32 0, %v43
    %v45 = vrot.slane %v41, %v44
    %vm46 = vcmask 130048
    %v48 = vsel %vm46, %v38, 0
    %50 = vmatprep.subr.mxu0 0.0
    %51 = vmatpush1.msra.mxu0 %v39
    %52 = vmatprep.subr.mxu0 0.0
    %53 = vmatpush1.msra.mxu0 %v40
    %54 = vmatprep.subr.mxu0 0.0
    %55 = vmatpush1.msra.mxu0 0.0
    %56 = vmatprep.subr.mxu0 0.0
    %57 = vmatpush1.msra.mxu0 0.0
    %58 = vmatprep.subr.mxu0 0.0
    %59 = vmatpush1.msra.mxu0 0.0
    %60 = vmatprep.subr.mxu0 0.0
    %61 = vmatpush1.msra.mxu0 0.0
    %62 = vmatprep.subr.mxu0 0.0
    %63 = vmatpush1.msra.mxu0 0.0
    %64 = vmatprep.subr.mxu0 0.0
    %65 = vmatpush1.msra.mxu0 0.0
    %66 = vmatprep.subr.mxu0 0.0
    %67 = vmatpush1.msra.mxu0 0.0
    %68 = vmatprep.subr.mxu0 0.0
    %69 = vmatpush1.msra.mxu0 0.0
    %70 = vmatprep.subr.mxu0 0.0
    %71 = vmatpush1.msra.mxu0 0.0
    %72 = vmatprep.subr.mxu0 0.0
    %73 = vmatpush1.msra.mxu0 0.0
    %74 = vmatprep.subr.mxu0 0.0
    %75 = vmatpush1.msra.mxu0 0.0
    %76 = vmatprep.subr.mxu0 0.0
    %77 = vmatpush1.msra.mxu0 0.0
    %78 = vmatprep.subr.mxu0 0.0
    %79 = vmatpush1.msra.mxu0 0.0
    %80 = vmatprep.subr.mxu0 0.0
    %81 = vmatpush1.msra.mxu0 0.0
    %82 = vmatprep.subr.mxu0 0.0
    %83 = vmatpush1.msra.mxu0 0.0
    %84 = vmatprep.subr.mxu0 0.0
    %85 = vmatpush1.msra.mxu0 0.0
    %86 = vmatprep.subr.mxu0 0.0
    %87 = vmatpush1.msra.mxu0 0.0
    %88 = vmatprep.subr.mxu0 0.0
    %89 = vmatpush1.msra.mxu0 0.0
    %90 = vmatprep.subr.mxu0 0.0
    %91 = vmatpush1.msra.mxu0 0.0
    %92 = vmatprep.subr.mxu0 0.0
    %93 = vmatpush1.msra.mxu0 0.0
    %94 = vmatprep.subr.mxu0 0.0
    %95 = vmatpush1.msra.mxu0 0.0
    %96 = vmatprep.subr.mxu0 0.0
    %97 = vmatpush1.msra.mxu0 0.0
    %98 = vmatprep.subr.mxu0 0.0
    %99 = vmatpush1.msra.mxu0 0.0
    %100 = vmatprep.subr.mxu0 0.0
    %101 = vmatpush1.msra.mxu0 0.0
    %102 = vmatprep.subr.mxu0 0.0
    %103 = vmatpush1.msra.mxu0 0.0
    %104 = vmatprep.subr.mxu0 0.0
    %105 = vmatpush1.msra.mxu0 0.0
    %106 = vmatprep.subr.mxu0 0.0
    %107 = vmatpush1.msra.mxu0 0.0
    %108 = vmatprep.subr.mxu0 0.0
    %109 = vmatpush1.msra.mxu0 0.0
    %110 = vmatprep.subr.mxu0 0.0
    %111 = vmatpush1.msra.mxu0 0.0
    %112 = vmatprep.subr.mxu0 0.0
    %113 = vmatpush1.msra.mxu0 0.0
    %114 = vmatprep.mubr.f32.mxu0 0.0
    %115 = vmatmul.mubr.f32.gmra.mrb[0].mxu0 %v48
    %v116 = vpop.f32.mrb[0].mxu0
    %v117 = vadd.f32 %v45, %v116
    %v118 = vpop.f32.mrb[0].mxu0
    %119 = vdwg.mxu0
    %v120 = vmul.f32 %v117, 0.01
    %v121 = vmax.f32 %v117, %v120
    %v122 = vld [vmem:[#allocation5 + $0x18] sm:$0xff]
    %v123 = vld [vmem:[#allocation5 + $0x20] sm:$0xff]
    %v124 = vld [vmem:[#allocation5 + $0x28] sm:$0xff]
    %v125 = vld [vmem:[#allocation5 + $0x30] sm:$0xff]
    %v126 = vld [vmem:[#allocation5 + $0x38] sm:$0xff]
    %v127 = vld [vmem:[#allocation5 + $0x40] sm:$0xff]
    %v128 = vld [vmem:[#allocation5 + $0x48] sm:$0xff]
    %v129 = vld [vmem:[#allocation5 + $0x50] sm:$0xff]
    %v130 = vld [vmem:[#allocation5 + $0x58] sm:$0xff]
    %v131 = vld [vmem:[#allocation5 + $0x60] sm:$0xff]
    %v132 = vld [vmem:[#allocation5 + $0x68] sm:$0xff]
    %v133 = vld [vmem:[#allocation5 + $0x70] sm:$0xff]
    %v134 = vld [vmem:[#allocation5 + $0x78] sm:$0xff]
    %v135 = vld [vmem:[#allocation5 + $0x80] sm:$0xff]
    %v136 = vld [vmem:[#allocation5 + $0x88] sm:$0xff]
    %v137 = vld [vmem:[#allocation5 + $0x90] sm:$0xff]
    %v138 = vld [vmem:[#allocation5 + $0x98] sm:$0x1]
    %v139 = vlaneseq
    %v140 = vshrl.u32 %v139, 7
    %v141 = vsub.s32 0, %v140
    %v142 = vrot.slane %v138, %v141
    %143 = vmatprep.subr.mxu0 0.0
    %144 = vmatpush1.msra.mxu0 %v122
    %145 = vmatprep.subr.mxu0 0.0
    %146 = vmatpush1.msra.mxu0 %v123
    %147 = vmatprep.subr.mxu0 0.0
    %148 = vmatpush1.msra.mxu0 %v124
    %149 = vmatprep.subr.mxu0 0.0
    %150 = vmatpush1.msra.mxu0 %v125
    %151 = vmatprep.subr.mxu0 0.0
    %152 = vmatpush1.msra.mxu0 %v126
    %153 = vmatprep.subr.mxu0 0.0
    %154 = vmatpush1.msra.mxu0 %v127
    %155 = vmatprep.subr.mxu0 0.0
    %156 = vmatpush1.msra.mxu0 %v128
    %157 = vmatprep.subr.mxu0 0.0
    %158 = vmatpush1.msra.mxu0 %v129
    %159 = vmatprep.subr.mxu0 0.0
    %160 = vmatpush1.msra.mxu0 %v130
    %161 = vmatprep.subr.mxu0 0.0
    %162 = vmatpush1.msra.mxu0 %v131
    %163 = vmatprep.subr.mxu0 0.0
    %164 = vmatpush1.msra.mxu0 %v132
    %165 = vmatprep.subr.mxu0 0.0
    %166 = vmatpush1.msra.mxu0 %v133
    %167 = vmatprep.subr.mxu0 0.0
    %168 = vmatpush1.msra.mxu0 %v134
    %169 = vmatprep.subr.mxu0 0.0
    %170 = vmatpush1.msra.mxu0 %v135
    %171 = vmatprep.subr.mxu0 0.0
    %172 = vmatpush1.msra.mxu0 %v136
    %173 = vmatprep.subr.mxu0 0.0
    %174 = vmatpush1.msra.mxu0 %v137
    %175 = vmatprep.subr.mxu0 0.0
    %176 = vmatpush1.msra.mxu0 0.0
    %177 = vmatprep.subr.mxu0 0.0
    %178 = vmatpush1.msra.mxu0 0.0
    %179 = vmatprep.subr.mxu0 0.0
    %180 = vmatpush1.msra.mxu0 0.0
    %181 = vmatprep.subr.mxu0 0.0
    %182 = vmatpush1.msra.mxu0 0.0
    %183 = vmatprep.subr.mxu0 0.0
    %184 = vmatpush1.msra.mxu0 0.0
    %185 = vmatprep.subr.mxu0 0.0
    %186 = vmatpush1.msra.mxu0 0.0
    %187 = vmatprep.subr.mxu0 0.0
    %188 = vmatpush1.msra.mxu0 0.0
    %189 = vmatprep.subr.mxu0 0.0
    %190 = vmatpush1.msra.mxu0 0.0
    %191 = vmatprep.subr.mxu0 0.0
    %192 = vmatpush1.msra.mxu0 0.0
    %193 = vmatprep.subr.mxu0 0.0
    %194 = vmatpush1.msra.mxu0 0.0
    %195 = vmatprep.subr.mxu0 0.0
    %196 = vmatpush1.msra.mxu0 0.0
    %197 = vmatprep.subr.mxu0 0.0
    %198 = vmatpush1.msra.mxu0 0.0
    %199 = vmatprep.subr.mxu0 0.0
    %200 = vmatpush1.msra.mxu0 0.0
    %201 = vmatprep.subr.mxu0 0.0
    %202 = vmatpush1.msra.mxu0 0.0
    %203 = vmatprep.subr.mxu0 0.0
    %204 = vmatpush1.msra.mxu0 0.0
    %205 = vmatprep.subr.mxu0 0.0
    %206 = vmatpush1.msra.mxu0 0.0
    %207 = vmatprep.mubr.f32.mxu0 0.0
    %208 = vmatmul.mubr.f32.gmra.mrb[0].mxu0 %v121
    %v209 = vpop.f32.mrb[0].mxu0
    %v210 = vadd.f32 %v142, %v209
    %v211 = vpop.f32.mrb[0].mxu0
    %212 = vdwg.mxu0
    %v213 = vmul.f32 %v210, 0.01
    %v214 = vmax.f32 %v210, %v213
    %v215 = vld [vmem:[#allocation5 + $0xa0] sm:$0xff]
    %v216 = vld [vmem:[#allocation5 + $0xa8] sm:$0xff]
    %v217 = vld [vmem:[#allocation5 + $0xb0] sm:$0xff]
    %v218 = vld [vmem:[#allocation5 + $0xb8] sm:$0xff]
    %v219 = vld [vmem:[#allocation5 + $0xc0] sm:$0xff]
    %v220 = vld [vmem:[#allocation5 + $0xc8] sm:$0xff]
    %v221 = vld [vmem:[#allocation5 + $0xd0] sm:$0xff]
    %v222 = vld [vmem:[#allocation5 + $0xd8] sm:$0xff]
    %v223 = vld [vmem:[#allocation5 + $0xe0] sm:$0xff]
    %v224 = vld [vmem:[#allocation5 + $0xe8] sm:$0xff]
    %v225 = vld [vmem:[#allocation5 + $0xf0] sm:$0xff]
    %v226 = vld [vmem:[#allocation5 + $0xf8] sm:$0xff]
    %v227 = vld [vmem:[#allocation5 + $0x100] sm:$0xff]
    %v228 = vld [vmem:[#allocation5 + $0x108] sm:$0xff]
    %v229 = vld [vmem:[#allocation5 + $0x110] sm:$0xff]
    %v230 = vld [vmem:[#allocation5 + $0x118] sm:$0xff]
    %v231 = vld [vmem:[#allocation5 + $0x120] sm:$0x1]
    %v232 = vlaneseq
    %v233 = vshrl.u32 %v232, 7
    %v234 = vsub.s32 0, %v233
    %v235 = vrot.slane %v231, %v234
    %236 = vmatprep.subr.mxu0 0.0
    %237 = vmatpush1.msra.mxu0 %v215
    %238 = vmatprep.subr.mxu0 0.0
    %239 = vmatpush1.msra.mxu0 %v216
    %240 = vmatprep.subr.mxu0 0.0
    %241 = vmatpush1.msra.mxu0 %v217
    %242 = vmatprep.subr.mxu0 0.0
    %243 = vmatpush1.msra.mxu0 %v218
    %244 = vmatprep.subr.mxu0 0.0
    %245 = vmatpush1.msra.mxu0 %v219
    %246 = vmatprep.subr.mxu0 0.0
    %247 = vmatpush1.msra.mxu0 %v220
    %248 = vmatprep.subr.mxu0 0.0
    %249 = vmatpush1.msra.mxu0 %v221
    %250 = vmatprep.subr.mxu0 0.0
    %251 = vmatpush1.msra.mxu0 %v222
    %252 = vmatprep.subr.mxu0 0.0
    %253 = vmatpush1.msra.mxu0 %v223
    %254 = vmatprep.subr.mxu0 0.0
    %255 = vmatpush1.msra.mxu0 %v224
    %256 = vmatprep.subr.mxu0 0.0
    %257 = vmatpush1.msra.mxu0 %v225
    %258 = vmatprep.subr.mxu0 0.0
    %259 = vmatpush1.msra.mxu0 %v226
    %260 = vmatprep.subr.mxu0 0.0
    %261 = vmatpush1.msra.mxu0 %v227
    %262 = vmatprep.subr.mxu0 0.0
    %263 = vmatpush1.msra.mxu0 %v228
    %264 = vmatprep.subr.mxu0 0.0
    %265 = vmatpush1.msra.mxu0 %v229
    %266 = vmatprep.subr.mxu0 0.0
    %267 = vmatpush1.msra.mxu0 %v230
    %268 = vmatprep.subr.mxu0 0.0
    %269 = vmatpush1.msra.mxu0 0.0
    %270 = vmatprep.subr.mxu0 0.0
    %271 = vmatpush1.msra.mxu0 0.0
    %272 = vmatprep.subr.mxu0 0.0
    %273 = vmatpush1.msra.mxu0 0.0
    %274 = vmatprep.subr.mxu0 0.0
    %275 = vmatpush1.msra.mxu0 0.0
    %276 = vmatprep.subr.mxu0 0.0
    %277 = vmatpush1.msra.mxu0 0.0
    %278 = vmatprep.subr.mxu0 0.0
    %279 = vmatpush1.msra.mxu0 0.0
    %280 = vmatprep.subr.mxu0 0.0
    %281 = vmatpush1.msra.mxu0 0.0
    %282 = vmatprep.subr.mxu0 0.0
    %283 = vmatpush1.msra.mxu0 0.0
    %284 = vmatprep.subr.mxu0 0.0
    %285 = vmatpush1.msra.mxu0 0.0
    %286 = vmatprep.subr.mxu0 0.0
    %287 = vmatpush1.msra.mxu0 0.0
    %288 = vmatprep.subr.mxu0 0.0
    %289 = vmatpush1.msra.mxu0 0.0
    %290 = vmatprep.subr.mxu0 0.0
    %291 = vmatpush1.msra.mxu0 0.0
    %292 = vmatprep.subr.mxu0 0.0
    %293 = vmatpush1.msra.mxu0 0.0
    %294 = vmatprep.subr.mxu0 0.0
    %295 = vmatpush1.msra.mxu0 0.0
    %296 = vmatprep.subr.mxu0 0.0
    %297 = vmatpush1.msra.mxu0 0.0
    %298 = vmatprep.subr.mxu0 0.0
    %299 = vmatpush1.msra.mxu0 0.0
    %300 = vmatprep.mubr.f32.mxu0 0.0
    %301 = vmatmul.mubr.f32.gmra.mrb[0].mxu0 %v214
    %v302 = vpop.f32.mrb[0].mxu0
    %v303 = vadd.f32 %v235, %v302
    %v304 = vpop.f32.mrb[0].mxu0
    %305 = vdwg.mxu0
    %v306 = vmul.f32 %v303, 0.5
    %v307 = vtanh.pop %v306
    %v308 = vadd.f32 %v307, 1.0
    %v309 = vmul.f32 %v308, 0.5
    %310 = vst [vmem:[#allocation7] sm:$0xff] %v309
    // Predicated region
    $region18: #{tpu_custom_call.1} parent=1 // pred_check
      _
    $region19: #{tpu_custom_call.1} parent=1 // pred_check_branch
      %312 = sbr.rel (0) target = $region21
    $region20: #{tpu_custom_call.1} parent=1 // pred_region
      %s314 = ssub.s32 128, 128
      %315 = vsyncadd [#allocation4], %s314
      %s317 = sshll.u32 [#allocation7], 4
      %s318 = int_to_ptr.vmem [resolvable:$true] %s317
      %320 = dma.vmem_to_hbm [thread:$0]  %s318, 128, %s2, [#allocation4]
    $region21: #{tpu_custom_call.1} parent=1 // pred_fallthru
      _
    // Predicated region
    $region22: #{tpu_custom_call.1} parent=1 // pred_check
      _
    $region23: #{tpu_custom_call.1} parent=1 // pred_check_branch
      %322 = sbr.rel (0) target = $region25
    $region24: #{tpu_custom_call.1} parent=1 // pred_region
      %323 = dma.done [#allocation4], 128
    $region25: #{tpu_custom_call.1} parent=1 // pred_fallthru
      _
    %324 = vsyncpa [#allocation3], 1
    %325 = vsyncpa [#allocation6], 1
    %326 = vsyncpa [#allocation4], 1

</llo_original>
